<compile_context>
chip_gen: v7x
topology: tpu7x:2x2x1
jax: 0.10.0
libtpu: 0.0.40
codegen_flags: <defaults>
</compile_context>

<pallas_src>
import jax
import jax.numpy as jnp
from jax.experimental import pallas as pl
from jax.experimental.pallas import tpu as pltpu

_LANE = 128
# Below this many elements the pallas_call launch/DMA setup dwarfs the useful
# memory traffic; XLA's fused elementwise op is strictly faster.
_MIN_PALLAS_ELEMS = 1 << 14
# ~2 MiB per stream per buffer; 4 streams x 2 buffers ~= 16 MiB of VMEM.
_BLOCK_BYTES_TARGET = 2 * 1024 * 1024
# Explicit scoped-VMEM limit: safe on v5e/v6e (128 MiB physical) and within
# v7x's 64 MiB per-TC physical VMEM.
_VMEM_LIMIT_BYTES = 32 * 1024 * 1024
# Minimum number of grid blocks (when rows permit) so prefetch/writeback
# overlap kicks in; forced even so the 2 v7x TensorCores stay balanced.
_MIN_BLOCKS = 4


def _sampler_kernel(mu_ref, logvar_ref, eps_ref, out_ref):
    # std in f32 (variance precision), multiply/add in the input dtype so
    # bf16 data stays sublane-packed on v6e/v7x.
    std = jnp.exp(0.5 * logvar_ref[...].astype(jnp.float32)).astype(out_ref.dtype)
    out_ref[...] = eps_ref[...] * std + mu_ref[...]


def _xla_sampler(mu, logvar, eps):
    std = jnp.exp(0.5 * logvar.astype(jnp.float32)).astype(mu.dtype)
    return (eps.astype(mu.dtype) * std + mu).astype(mu.dtype)


def _sublane_for(itemsize):
    # Packed-sublane granule: 8 rows f32, 16 rows bf16/f16, 32 rows int8/fp8.
    return max(8, 32 // int(itemsize))


def _choose_block_rows(rows, lane_padded, itemsize, sublane):
    """Rows per block: ~_BLOCK_BYTES_TARGET per stream per buffer, >=4 balanced
    even-count blocks when rows permit, aligned to the packed sublane."""
    row_bytes = lane_padded * itemsize          # VMEM footprint of one row
    tb_cap = _BLOCK_BYTES_TARGET // row_bytes
    tb_cap = max(sublane, (tb_cap // sublane) * sublane)

    nblk = pl.cdiv(rows, tb_cap)
    nblk = max(nblk, _MIN_BLOCKS)
    if nblk % 2:
        nblk += 1                               # even -> balanced across 2 TCs
    tb = pl.cdiv(rows, nblk)
    tb = pl.cdiv(tb, sublane) * sublane         # round UP to packed sublane

    if tb >= rows:
        return rows                             # tiny input: one full-extent block
    return tb


def pallas_sampler(mu, logvar, eps=None, *, key=None,
                   min_pallas_elems=_MIN_PALLAS_ELEMS):
    """JAX/Pallas equivalent of sampler.forward(mu, logvar, eps)."""
    assert mu.shape == logvar.shape
    shape, dtype, n = mu.shape, mu.dtype, mu.size
    itemsize = jnp.dtype(dtype).itemsize

    if eps is None:
        if key is None:
            raise ValueError(
                "pallas_sampler: pass `key=` when eps is None so fresh noise is "
                "drawn every call (a fixed default key would silently reuse noise).")
        # TODO(synk): optionally fuse eps generation in-kernel with
        # pltpu.prng_seed/stateful_normal on real TPU hardware only; it has no
        # CPU/interpret lowering and can flip the kernel EUP-bound on v5e/v7x.
        eps = jax.random.normal(key, shape, dtype=dtype)
    else:
        assert eps.shape == mu.shape

    # Tiny latents: skip Pallas, launch overhead dominates.
    if n < max(min_pallas_elems, 1):
        return _xla_sampler(mu, logvar, eps)

    if n % _LANE == 0:
        # Lane-dense full flatten: free reshape, every vst unmasked.
        lane = next(l for l in (512, 256, _LANE) if n % l == 0)
        rows = n // lane
    else:
        # Ragged total count: collapse leading dims (free reshape), keep the
        # original last dim as the (full-extent) lane block.  No pad copies,
        # no output slice; the ragged last row-block is masked by Pallas.
        lane = shape[-1] if mu.ndim >= 1 else 1
        rows = n // lane

    sublane = _sublane_for(itemsize)
    lane_padded = pl.cdiv(lane, _LANE) * _LANE  # VMEM lane padding

    # If even a minimum block would blow the VMEM budget (huge ragged last
    # dim, e.g. a giant 1-D array of odd length), fall back to fused XLA.
    min_block_vmem = sublane * lane_padded * itemsize
    if 2 * 4 * min_block_vmem > (_VMEM_LIMIT_BYTES * 3) // 4:
        # TODO(synk): stream such shapes manually with memory_space=pl.ANY DMAs.
        return _xla_sampler(mu, logvar, eps)

    tb = _choose_block_rows(rows, lane_padded, itemsize, sublane)
    grid = (pl.cdiv(rows, tb),)
    spec = pl.BlockSpec((tb, lane), lambda i: (i, 0))

    mu2d = mu.reshape(rows, lane)
    logvar2d = logvar.reshape(rows, lane)
    eps2d = eps.reshape(rows, lane)

    out2d = pl.pallas_call(
        _sampler_kernel,
        out_shape=jax.ShapeDtypeStruct((rows, lane), dtype),
        grid=grid,
        in_specs=[spec, spec, spec],
        out_specs=spec,
        compiler_params=pltpu.CompilerParams(
            dimension_semantics=("parallel",),
            vmem_limit_bytes=_VMEM_LIMIT_BYTES),
    )(mu2d, logvar2d, eps2d)

    return out2d.reshape(shape)


if __name__ == "__main__":
    key = jax.random.PRNGKey(0)
    k_mu, k_lv, k_eps, k_noise, k_bf = jax.random.split(key, 5)

    # --- small shape consistent with the module (batch=2, latent=32) -------
    batch, latent = 2, 32
    mu = jax.random.normal(k_mu, (batch, latent), dtype=jnp.float32)
    logvar = jax.random.normal(k_lv, (batch, latent), dtype=jnp.float32)
    eps = jax.random.normal(k_eps, (batch, latent), dtype=jnp.float32)

    out = pallas_sampler(mu, logvar, eps, min_pallas_elems=0)  # force Pallas
    jax.block_until_ready(out)
    ref = eps * jnp.exp(0.5 * logvar) + mu
    assert out.shape == ref.shape and out.dtype == ref.dtype
    assert jnp.allclose(out, ref, atol=1e-5, rtol=1e-5)

    # --- larger shape: lane-dense flatten, 4 balanced pipelined blocks -----
    B, L = 2048, 512
    mu2 = jax.random.normal(k_mu, (B, L), dtype=jnp.float32)
    logvar2 = 0.1 * jax.random.normal(k_lv, (B, L), dtype=jnp.float32)
    eps2 = jax.random.normal(k_eps, (B, L), dtype=jnp.float32)

    out2 = pallas_sampler(mu2, logvar2, eps2)
    jax.block_until_ready(out2)
    ref2 = eps2 * jnp.exp(0.5 * logvar2) + mu2
    assert jnp.allclose(out2, ref2, atol=1e-5, rtol=1e-5)

    # --- ragged element count: boundary-masked blocks, no pad/slice copies -
    mu3 = jax.random.normal(k_mu, (37, 100), dtype=jnp.float32)
    logvar3 = 0.1 * jax.random.normal(k_lv, (37, 100), dtype=jnp.float32)
    eps3 = jax.random.normal(k_eps, (37, 100), dtype=jnp.float32)
    out3 = pallas_sampler(mu3, logvar3, eps3, min_pallas_elems=0)
    jax.block_until_ready(out3)
    ref3 = eps3 * jnp.exp(0.5 * logvar3) + mu3
    assert jnp.allclose(out3, ref3, atol=1e-5, rtol=1e-5)

    # --- bf16: packed-sublane (16) alignment, exp kept in f32 --------------
    mu4 = jax.random.normal(k_bf, (256, 384), dtype=jnp.bfloat16)
    logvar4 = (0.1 * jax.random.normal(k_lv, (256, 384))).astype(jnp.bfloat16)
    eps4 = jax.random.normal(k_eps, (256, 384), dtype=jnp.bfloat16)
    out4 = pallas_sampler(mu4, logvar4, eps4)
    jax.block_until_ready(out4)
    ref4 = (eps4.astype(jnp.float32)
            * jnp.exp(0.5 * logvar4.astype(jnp.float32))
            + mu4.astype(jnp.float32))
    assert out4.dtype == jnp.bfloat16
    assert jnp.allclose(out4.astype(jnp.float32), ref4, atol=5e-2, rtol=5e-2)

    # --- eps=None path: fresh noise via jax.random, check N(0,1) stats -----
    out_rng = pallas_sampler(mu2, logvar2, key=k_noise)
    jax.block_until_ready(out_rng)
    z = (out_rng - mu2) / jnp.exp(0.5 * logvar2)
    assert bool(jnp.all(jnp.isfinite(out_rng)))
    assert float(jnp.abs(jnp.mean(z))) < 0.05
    assert float(jnp.abs(jnp.std(z) - 1.0)) < 0.05

    print("KERNEL_OK")
</pallas_src>

<mosaic_0001>
module attributes {stable_mosaic.version = 11 : i64} {
  func.func @_sampler_kernel(%arg0: i32, %arg1: memref<2x32xf32, #tpu.memory_space<vmem>>, %arg2: memref<2x32xf32, #tpu.memory_space<vmem>>, %arg3: memref<2x32xf32, #tpu.memory_space<vmem>>, %arg4: memref<2x32xf32, #tpu.memory_space<vmem>>) attributes {dimension_semantics = [#tpu.dimension_semantics<parallel>], iteration_bounds = array<i64: 1>, scalar_prefetch = 0 : i64, scratch_operands = 0 : i64, tpu.core_type = #tpu.core_type<tc>, window_params = [{transform_indices = @transform_0, window_bounds = array<i64: 2, 32>}, {transform_indices = @transform_1, window_bounds = array<i64: 2, 32>}, {transform_indices = @transform_2, window_bounds = array<i64: 2, 32>}, {transform_indices = @transform_3, window_bounds = array<i64: 2, 32>}]} {
    %c0 = arith.constant 0 : index
    %c0_0 = arith.constant 0 : index
    %0 = vector.load %arg2[%c0, %c0_0] : memref<2x32xf32, #tpu.memory_space<vmem>>, vector<2x32xf32>
    %cst = arith.constant 5.000000e-01 : f32
    %1 = vector.broadcast %cst : f32 to vector<2x32xf32>
    %2 = arith.mulf %1, %0 : vector<2x32xf32>
    %3 = math.exp %2 : vector<2x32xf32>
    %c0_1 = arith.constant 0 : index
    %c0_2 = arith.constant 0 : index
    %4 = vector.load %arg3[%c0_1, %c0_2] : memref<2x32xf32, #tpu.memory_space<vmem>>, vector<2x32xf32>
    %5 = arith.mulf %4, %3 : vector<2x32xf32>
    %c0_3 = arith.constant 0 : index
    %c0_4 = arith.constant 0 : index
    %6 = vector.load %arg1[%c0_3, %c0_4] : memref<2x32xf32, #tpu.memory_space<vmem>>, vector<2x32xf32>
    %7 = arith.addf %5, %6 : vector<2x32xf32>
    %c0_5 = arith.constant 0 : index
    %c0_6 = arith.constant 0 : index
    %8 = vector.load %arg4[%c0_5, %c0_6] : memref<2x32xf32, #tpu.memory_space<vmem>>, vector<2x32xf32>
    tpu.vector_store %arg4[%c0_5, %c0_6], %7 {strides = array<i32>} : memref<2x32xf32, #tpu.memory_space<vmem>>, vector<2x32xf32>,
    return
  }
  func.func @transform_0(%arg0: i32) -> (i32, i32) {
    %c0_i32 = arith.constant 0 : i32
    %c0_i32_0 = arith.constant 0 : i32
    return %arg0, %c0_i32 : i32, i32
  }
  func.func @transform_1(%arg0: i32) -> (i32, i32) {
    %c0_i32 = arith.constant 0 : i32
    %c0_i32_0 = arith.constant 0 : i32
    return %arg0, %c0_i32 : i32, i32
  }
  func.func @transform_2(%arg0: i32) -> (i32, i32) {
    %c0_i32 = arith.constant 0 : i32
    %c0_i32_0 = arith.constant 0 : i32
    return %arg0, %c0_i32 : i32, i32
  }
  func.func @transform_3(%arg0: i32) -> (i32, i32) {
    %c0_i32 = arith.constant 0 : i32
    %c0_i32_0 = arith.constant 0 : i32
    return %arg0, %c0_i32 : i32, i32
  }
}

</mosaic_0001>

<llo_original>
// kernel: tpu_custom_call.1
$region0: #{tpu_custom_call.1}
  #allocation0 [shape = 'u32[]', space=smem, size = 0x4, offset = 0x4, fixed_abs, tag = 'smem constant byte address 0x4 - core index']
  #allocation1 [shape = 'u32[144,128]{1,0:T(1,128)}', space=vmem, size = 0x12000, scoped, tag = 'internal scratch']
  %s0 = inlined_call_operand.hbm [shape: f32[2,32], index: 0, kind: input, shape index: {}]
  %s1 = inlined_call_operand.vmem [shape: f32[2,32], index: 1, kind: input, shape index: {}]
  %s2 = inlined_call_operand.vmem [shape: f32[2,32], index: 2, kind: input, shape index: {}]
  %s3 = inlined_call_operand.hbm [shape: f32[2,32], index: 3, kind: output, shape index: {}]
  %s4 = sld [smem:[#allocation0]]
  $region26: #{tpu_custom_call.1} parent=0
    _
  %s6 = ssub.s32 1, %s4
  %s7 = scalar_select 0, %s6, %s4
  $region1: #{tpu_custom_call.1} parent=0
    #allocation2 [shape = 'u8[1024]{0}', space=vmem, size = 0x400, scoped, tag = 'input window, operand 0, single buffered']
    #allocation3 [shape = 's32[1]{0}', space=sflag, size = 0x4, scoped, tag = 'scoped memory for tpu_custom_call.1']
    #allocation4 [shape = 's32[1]{0}', space=sflag, size = 0x4, scoped, tag = 'scoped memory for tpu_custom_call.1']
    #allocation5 [shape = 'u8[1024]{0}', space=vmem, size = 0x400, scoped, tag = 'output window, operand 0, single buffered']
    %8 = vsyncpa [#allocation3], 0
    %9 = vsyncpa [#allocation4], 0
    // Predicated region
    $region2: #{tpu_custom_call.1} parent=1 // pred_check
      _
    $region3: #{tpu_custom_call.1} parent=1 // pred_check_branch
      %11 = sbr.rel (0) target = $region5
    $region4: #{tpu_custom_call.1} parent=1 // pred_region
      %s13 = ssub.s32 32, 32
      %14 = vsyncadd [#allocation3], %s13
      %s16 = sshll.u32 [#allocation2], 4
      %s17 = int_to_ptr.vmem [resolvable:$true] %s16
      %19 = dma.hbm_to_vmem [thread:$0]  %s0, 32, %s17, [#allocation3]
    $region5: #{tpu_custom_call.1} parent=1 // pred_fallthru
      _
    // Predicated region
    $region6: #{tpu_custom_call.1} parent=1 // pred_check
      _
    $region7: #{tpu_custom_call.1} parent=1 // pred_check_branch
      %21 = sbr.rel (0) target = $region9
    $region8: #{tpu_custom_call.1} parent=1 // pred_region
      _
    $region9: #{tpu_custom_call.1} parent=1 // pred_fallthru
      _
    // Predicated region
    $region10: #{tpu_custom_call.1} parent=1 // pred_check
      _
    $region11: #{tpu_custom_call.1} parent=1 // pred_check_branch
      %23 = sbr.rel (0) target = $region13
    $region12: #{tpu_custom_call.1} parent=1 // pred_region
      _
    $region13: #{tpu_custom_call.1} parent=1 // pred_fallthru
      _
    // Predicated region
    $region14: #{tpu_custom_call.1} parent=1 // pred_check
      _
    $region15: #{tpu_custom_call.1} parent=1 // pred_check_branch
      %25 = sbr.rel (0) target = $region17
    $region16: #{tpu_custom_call.1} parent=1 // pred_region
      %26 = dma.done [#allocation3], 32
    $region17: #{tpu_custom_call.1} parent=1 // pred_fallthru
      _
    %v27 = vld [vmem:[%s1] sm:$0x3]
    %v28 = vmul.f32 %v27, 0.5
    %v29 = vmul.f32 %v28, 1.442695
    %v30 = vpow.pop %v29
    %v31 = vld [vmem:[%s2] sm:$0x3]
    %v32 = vmul.f32 %v31, %v30
    %v33 = vld [vmem:[#allocation2] sm:$0x3]
    %v34 = vadd.f32 %v32, %v33
    %vm35 = vcmask 254976
    %36 = vst.msk [vmem:[#allocation5] sm:$0x3] %vm35, %v34
    // Predicated region
    $region18: #{tpu_custom_call.1} parent=1 // pred_check
      _
    $region19: #{tpu_custom_call.1} parent=1 // pred_check_branch
      %38 = sbr.rel (0) target = $region21
    $region20: #{tpu_custom_call.1} parent=1 // pred_region
      %s40 = ssub.s32 32, 32
      %41 = vsyncadd [#allocation4], %s40
      %s43 = sshll.u32 [#allocation5], 4
      %s44 = int_to_ptr.vmem [resolvable:$true] %s43
      %46 = dma.vmem_to_hbm [thread:$0]  %s44, 32, %s3, [#allocation4]
    $region21: #{tpu_custom_call.1} parent=1 // pred_fallthru
      _
    // Predicated region
    $region22: #{tpu_custom_call.1} parent=1 // pred_check
      _
    $region23: #{tpu_custom_call.1} parent=1 // pred_check_branch
      %48 = sbr.rel (0) target = $region25
    $region24: #{tpu_custom_call.1} parent=1 // pred_region
      %49 = dma.done [#allocation4], 32
    $region25: #{tpu_custom_call.1} parent=1 // pred_fallthru
      _
    %50 = vsyncpa [#allocation3], 1
    %51 = vsyncpa [#allocation4], 1

</llo_original>
